<compile_context>
chip_gen: v7x
topology: tpu7x:2x2x1
jax: 0.10.0
libtpu: 0.0.40
codegen_flags: <defaults>
</compile_context>

<pallas_src>
import functools

import jax
import jax.numpy as jnp
from jax.experimental import pallas as pl
from jax.experimental.pallas import tpu as pltpu


# ------------------------------- kernel --------------------------------------
def _ca_kernel(x_ref,                       # (1, C, THW) current spatial tile
               w1_ref, s1_ref, t1_ref,      # fused stage-1: (C+C4,C),(C+C4,1)x2
               w2c_ref, s2c_ref, t2c_ref,   # color stage-2
               w2h_ref, b2h_ref,            # hsv   stage-2
               ws1_ref, ws2_ref,            # shared SE weights
               out_ref,                     # (1, C, 1)
               xmax_sc, xsum_sc, cmax_sc, hmax_sc,   # (C, 1) accumulators
               *, hw, c, c4, tile_hw, ragged):
    k = pl.program_id(1)

    # ---- init running pools at the first spatial tile of this image --------
    @pl.when(k == 0)
    def _():
        xmax_sc[...] = jnp.full_like(xmax_sc, -jnp.inf)
        cmax_sc[...] = jnp.full_like(cmax_sc, -jnp.inf)
        hmax_sc[...] = jnp.full_like(hmax_sc, -jnp.inf)
        xsum_sc[...] = jnp.zeros_like(xsum_sc)

    x = x_ref[0]                                   # (C, THW), f32

    if ragged:
        col = jax.lax.broadcasted_iota(jnp.int32, (1, tile_hw), 1)
        valid = (k * tile_hw + col) < hw           # (1, THW) mask for tail tile
        x_for_max = jnp.where(valid, x, -jnp.inf)
        x_for_sum = jnp.where(valid, x, 0.0)
    else:
        valid = None
        x_for_max = x
        x_for_sum = x

    # ---- global max / avg pools of x (running) -----------------------------
    xmax_sc[...] = jnp.maximum(xmax_sc[...],
                               jnp.max(x_for_max, axis=1, keepdims=True))
    xsum_sc[...] = xsum_sc[...] + jnp.sum(x_for_sum, axis=1, keepdims=True)

    # ---- fused first-stage projection (color | hsv), BN + ReLU -------------
    h = jnp.dot(w1_ref[...], x, preferred_element_type=jnp.float32)  # (C+C4,T)
    h = jnp.maximum(h * s1_ref[...] + t1_ref[...], 0.0)
    h_c = h[:c]                                    # (C,  THW) color branch
    h_h = h[c:c + c4]                              # (C4, THW) hsv   branch

    # ---- color branch second conv + BN, running max -------------------------
    color = jnp.dot(w2c_ref[...], h_c, preferred_element_type=jnp.float32)
    color = color * s2c_ref[...] + t2c_ref[...]
    if ragged:
        color = jnp.where(valid, color, -jnp.inf)
    cmax_sc[...] = jnp.maximum(cmax_sc[...],
                               jnp.max(color, axis=1, keepdims=True))

    # ---- hsv branch second conv (bias added after the max), running max ----
    hsv = jnp.dot(w2h_ref[...], h_h, preferred_element_type=jnp.float32)
    if ragged:
        hsv = jnp.where(valid, hsv, -jnp.inf)
    hmax_sc[...] = jnp.maximum(hmax_sc[...],
                               jnp.max(hsv, axis=1, keepdims=True))

    # ---- epilogue: batched SE + sigmoid, once per image ---------------------
    @pl.when(k == pl.num_programs(1) - 1)
    def _():
        x_avg = xsum_sc[...] * (1.0 / float(hw))          # (C, 1)
        hsv_max = hmax_sc[...] + b2h_ref[...]             # bias constant in HW
        pooled = jnp.concatenate(
            [xmax_sc[...], x_avg, cmax_sc[...], hsv_max], axis=1)   # (C, 4)
        z = jnp.maximum(
            jnp.dot(ws1_ref[...], pooled, preferred_element_type=jnp.float32),
            0.0)                                                    # (Cr, 4)
        se_out = jnp.dot(ws2_ref[...], z,
                         preferred_element_type=jnp.float32)        # (C, 4)
        total = jnp.sum(se_out, axis=1, keepdims=True)              # (C, 1)
        out_ref[0] = jax.nn.sigmoid(total)


# ------------------------------- wrapper --------------------------------------
def _pick_tile_hw(hw, c, budget_bytes=2 << 20):
    """Spatial tile: full HW when small, else a lane-aligned (x128) chunk."""
    if hw <= 2048:
        return hw
    t = (budget_bytes // (4 * c)) // 128 * 128
    t = max(128, min(t, 2048))
    return hw if t >= hw else t


def channel_attention_pallas(x_nchw, params, *, tile_hw=None):
    """x_nchw: (B, C, H, W) float32 -> attention map (B, C, 1, 1)."""
    B, C, H, W = x_nchw.shape
    HW = H * W
    x = x_nchw.reshape(B, C, HW)               # free reshape, no transpose

    (w1c, s1c, t1c, w2c, s2c, t2c,
     w1h, s1h, t1h, w2h, b2h, ws1, ws2) = params
    C4 = w1h.shape[0]
    Cr = ws1.shape[0]

    # Fuse the two first-stage projections along the output-channel axis.
    w1 = jnp.concatenate([w1c, w1h], axis=0)                 # (C+C4, C)
    s1 = jnp.concatenate([s1c, s1h]).reshape(-1, 1)          # (C+C4, 1)
    t1 = jnp.concatenate([t1c, t1h]).reshape(-1, 1)
    col = lambda v: v.reshape(-1, 1)
    s2c_, t2c_, b2h_ = col(s2c), col(t2c), col(b2h)

    if tile_hw is None:
        tile_hw = _pick_tile_hw(HW, C)
    kt = pl.cdiv(HW, tile_hw)
    ragged = (HW % tile_hw) != 0

    kernel = functools.partial(_ca_kernel, hw=HW, c=C, c4=C4,
                               tile_hw=tile_hw, ragged=ragged)

    wspec = lambda shape: pl.BlockSpec(shape, lambda b, k: (0, 0))

    out = pl.pallas_call(
        kernel,
        out_shape=jax.ShapeDtypeStruct((B, C, 1), jnp.float32),
        grid=(B, kt),
        in_specs=[
            pl.BlockSpec((1, C, tile_hw), lambda b, k: (b, 0, k)),  # x tile
            wspec((C + C4, C)),   # w1   (fused)
            wspec((C + C4, 1)),   # s1
            wspec((C + C4, 1)),   # t1
            wspec((C, C)),        # w2c
            wspec((C, 1)),        # s2c
            wspec((C, 1)),        # t2c
            wspec((C, C4)),       # w2h
            wspec((C, 1)),        # b2h
            wspec((Cr, C)),       # ws1
            wspec((C, Cr)),       # ws2
        ],
        out_specs=pl.BlockSpec((1, C, 1), lambda b, k: (b, 0, 0)),
        scratch_shapes=[pltpu.VMEM((C, 1), jnp.float32)] * 4,
        compiler_params=pltpu.CompilerParams(
            dimension_semantics=("parallel", "arbitrary"),
            vmem_limit_bytes=32 * 1024 * 1024),
    )(x, w1, s1, t1, w2c, s2c_, t2c_, w2h, b2h_, ws1, ws2)

    return out.reshape(B, C, 1, 1)


# ----------------------------- parameter setup --------------------------------
def _fold_bn(gamma, beta, mean, var, eps=1e-5):
    scale = gamma / jnp.sqrt(var + eps)
    shift = beta - mean * scale
    return scale, shift


def make_params(key, C, reduction=8):
    """Weights stored PyTorch-style (cout, cin); BN folded for inference."""
    C4 = C // 4
    Cr = C // reduction
    ks = jax.random.split(key, 16)

    def conv_w(k, cout, cin):
        bound = 1.0 / jnp.sqrt(cin)          # fan_in of a 1x1 conv
        return jax.random.uniform(k, (cout, cin), jnp.float32, -bound, bound)

    def bn_params(k, c):
        k1, k2, k3, k4 = jax.random.split(k, 4)
        gamma = 1.0 + 0.1 * jax.random.normal(k1, (c,), jnp.float32)
        beta = 0.1 * jax.random.normal(k2, (c,), jnp.float32)
        mean = 0.1 * jax.random.normal(k3, (c,), jnp.float32)
        var = 1.0 + 0.1 * jnp.abs(jax.random.normal(k4, (c,), jnp.float32))
        return gamma, beta, mean, var

    # color_conv: conv(C->C, no bias), BN(C), ReLU, conv(C->C, no bias), BN(C)
    w1c = conv_w(ks[0], C, C)
    s1c, t1c = _fold_bn(*bn_params(ks[1], C))
    w2c = conv_w(ks[2], C, C)
    s2c, t2c = _fold_bn(*bn_params(ks[3], C))

    # hsv_branch: conv(C->C4, bias), BN(C4), ReLU, conv(C4->C, bias)
    w1h = conv_w(ks[4], C4, C)
    b1h = 0.1 * jax.random.normal(ks[5], (C4,), jnp.float32)
    sc, sh = _fold_bn(*bn_params(ks[6], C4))
    s1h = sc
    t1h = b1h * sc + sh                      # fold conv bias through BN
    w2h = conv_w(ks[7], C, C4)
    b2h = 0.1 * jax.random.normal(ks[8], (C,), jnp.float32)

    # se: conv(C->Cr, no bias), ReLU, conv(Cr->C, no bias)
    ws1 = conv_w(ks[9], Cr, C)
    ws2 = conv_w(ks[10], C, Cr)

    return (w1c, s1c, t1c, w2c, s2c, t2c,
            w1h, s1h, t1h, w2h, b2h, ws1, ws2)


# ------------------------------- reference -------------------------------------
def channel_attention_ref(x_nchw, params):
    (w1c, s1c, t1c, w2c, s2c, t2c,
     w1h, s1h, t1h, w2h, b2h, ws1, ws2) = params
    B, C, H, W = x_nchw.shape
    x = x_nchw.reshape(B, C, H * W)                       # (B, C, HW)

    x_max = jnp.max(x, axis=-1)                           # (B, C)
    x_avg = jnp.mean(x, axis=-1)

    h_c = jnp.maximum(
        jnp.einsum('oc,bcn->bon', w1c, x) * s1c[:, None] + t1c[:, None], 0.0)
    color = jnp.einsum('oc,bcn->bon', w2c, h_c) * s2c[:, None] + t2c[:, None]
    color_max = jnp.max(color, axis=-1)

    h_h = jnp.maximum(
        jnp.einsum('oc,bcn->bon', w1h, x) * s1h[:, None] + t1h[:, None], 0.0)
    hsv = jnp.einsum('oc,bcn->bon', w2h, h_h) + b2h[:, None]
    hsv_max = jnp.max(hsv, axis=-1)

    se = lambda v: jnp.maximum(v @ ws1.T, 0.0) @ ws2.T    # (B, C) -> (B, C)
    total = se(x_max) + se(x_avg) + se(color_max) + se(hsv_max)
    return jax.nn.sigmoid(total).reshape(B, C, 1, 1)


if __name__ == "__main__":
    key = jax.random.PRNGKey(0)
    kx, kp = jax.random.split(key)

    B, C, H, W = 2, 16, 8, 8          # channel=16, reduction=8 -> Cr=2, C4=4
    x = jax.random.normal(kx, (B, C, H, W), jnp.float32)
    params = make_params(kp, C, reduction=8)

    out = channel_attention_pallas(x, params)
    out = jax.block_until_ready(out)

    ref = channel_attention_ref(x, params)
    assert out.shape == (B, C, 1, 1)
    assert jnp.allclose(out, ref, atol=1e-5, rtol=1e-5), "mismatch vs JAX reference"

    print("KERNEL_OK")
</pallas_src>

<mosaic_0001>
module attributes {stable_mosaic.version = 11 : i64} {
  func.func @_ca_kernel(%arg0: i32, %arg1: i32, %arg2: memref<1x16x64xf32, #tpu.memory_space<vmem>>, %arg3: memref<20x16xf32, #tpu.memory_space<vmem>>, %arg4: memref<20x1xf32, #tpu.memory_space<vmem>>, %arg5: memref<20x1xf32, #tpu.memory_space<vmem>>, %arg6: memref<16x16xf32, #tpu.memory_space<vmem>>, %arg7: memref<16x1xf32, #tpu.memory_space<vmem>>, %arg8: memref<16x1xf32, #tpu.memory_space<vmem>>, %arg9: memref<16x4xf32, #tpu.memory_space<vmem>>, %arg10: memref<16x1xf32, #tpu.memory_space<vmem>>, %arg11: memref<2x16xf32, #tpu.memory_space<vmem>>, %arg12: memref<16x2xf32, #tpu.memory_space<vmem>>, %arg13: memref<1x16x1xf32, #tpu.memory_space<vmem>>, %arg14: memref<16x1xf32, #tpu.memory_space<vmem>>, %arg15: memref<16x1xf32, #tpu.memory_space<vmem>>, %arg16: memref<16x1xf32, #tpu.memory_space<vmem>>, %arg17: memref<16x1xf32, #tpu.memory_space<vmem>>) attributes {dimension_semantics = [#tpu.dimension_semantics<parallel>, #tpu.dimension_semantics<arbitrary>], iteration_bounds = array<i64: 2, 1>, scalar_prefetch = 0 : i64, scratch_operands = 4 : i64, tpu.core_type = #tpu.core_type<tc>, window_params = [{transform_indices = @transform_0, window_bounds = array<i64: 1, 16, 64>}, {pipeline_mode = #tpu.pipeline_mode<synchronous>, transform_indices = @transform_1, window_bounds = array<i64: 20, 16>}, {pipeline_mode = #tpu.pipeline_mode<synchronous>, transform_indices = @transform_2, window_bounds = array<i64: 20, 1>}, {pipeline_mode = #tpu.pipeline_mode<synchronous>, transform_indices = @transform_3, window_bounds = array<i64: 20, 1>}, {pipeline_mode = #tpu.pipeline_mode<synchronous>, transform_indices = @transform_4, window_bounds = array<i64: 16, 16>}, {pipeline_mode = #tpu.pipeline_mode<synchronous>, transform_indices = @transform_5, window_bounds = array<i64: 16, 1>}, {pipeline_mode = #tpu.pipeline_mode<synchronous>, transform_indices = @transform_6, window_bounds = array<i64: 16, 1>}, {pipeline_mode = #tpu.pipeline_mode<synchronous>, transform_indices = @transform_7, window_bounds = array<i64: 16, 4>}, {pipeline_mode = #tpu.pipeline_mode<synchronous>, transform_indices = @transform_8, window_bounds = array<i64: 16, 1>}, {pipeline_mode = #tpu.pipeline_mode<synchronous>, transform_indices = @transform_9, window_bounds = array<i64: 2, 16>}, {pipeline_mode = #tpu.pipeline_mode<synchronous>, transform_indices = @transform_10, window_bounds = array<i64: 16, 2>}, {transform_indices = @transform_11, window_bounds = array<i64: 1, 16, 1>}]} {
    %c0_i32 = arith.constant 0 : i32
    %0 = arith.cmpi eq, %arg1, %c0_i32 : i32
    %1 = arith.extui %0 : i1 to i32
    %c0_i32_0 = arith.constant 0 : i32
    %2 = arith.cmpi ne, %1, %c0_i32_0 : i32
    scf.if %2 {
      %cst_42 = arith.constant 0xFF800000 : f32
      %50 = vector.broadcast %cst_42 : f32 to vector<16x1xf32>
      %c0_43 = arith.constant 0 : index
      %c0_44 = arith.constant 0 : index
      %51 = vector.load %arg14[%c0_43, %c0_44] : memref<16x1xf32, #tpu.memory_space<vmem>>, vector<16x1xf32>
      tpu.vector_store %arg14[%c0_43, %c0_44], %50 {strides = array<i32>} : memref<16x1xf32, #tpu.memory_space<vmem>>, vector<16x1xf32>,
      %cst_45 = arith.constant 0xFF800000 : f32
      %52 = vector.broadcast %cst_45 : f32 to vector<16x1xf32>
      %c0_46 = arith.constant 0 : index
      %c0_47 = arith.constant 0 : index
      %53 = vector.load %arg16[%c0_46, %c0_47] : memref<16x1xf32, #tpu.memory_space<vmem>>, vector<16x1xf32>
      tpu.vector_store %arg16[%c0_46, %c0_47], %52 {strides = array<i32>} : memref<16x1xf32, #tpu.memory_space<vmem>>, vector<16x1xf32>,
      %cst_48 = arith.constant 0xFF800000 : f32
      %54 = vector.broadcast %cst_48 : f32 to vector<16x1xf32>
      %c0_49 = arith.constant 0 : index
      %c0_50 = arith.constant 0 : index
      %55 = vector.load %arg17[%c0_49, %c0_50] : memref<16x1xf32, #tpu.memory_space<vmem>>, vector<16x1xf32>
      tpu.vector_store %arg17[%c0_49, %c0_50], %54 {strides = array<i32>} : memref<16x1xf32, #tpu.memory_space<vmem>>, vector<16x1xf32>,
      %cst_51 = arith.constant 0.000000e+00 : f32
      %56 = vector.broadcast %cst_51 : f32 to vector<16x1xf32>
      %c0_52 = arith.constant 0 : index
      %c0_53 = arith.constant 0 : index
      %57 = vector.load %arg15[%c0_52, %c0_53] : memref<16x1xf32, #tpu.memory_space<vmem>>, vector<16x1xf32>
      tpu.vector_store %arg15[%c0_52, %c0_53], %56 {strides = array<i32>} : memref<16x1xf32, #tpu.memory_space<vmem>>, vector<16x1xf32>,
    } else {
    }
    %c0 = arith.constant 0 : index
    %c0_1 = arith.constant 0 : index
    %c0_2 = arith.constant 0 : index
    %3 = vector.load %arg2[%c0, %c0_1, %c0_2] : memref<1x16x64xf32, #tpu.memory_space<vmem>>, vector<1x16x64xf32>
    %4 = vector.shape_cast %3 : vector<1x16x64xf32> to vector<16x64xf32>
    %c0_3 = arith.constant 0 : index
    %c0_4 = arith.constant 0 : index
    %5 = vector.load %arg14[%c0_3, %c0_4] : memref<16x1xf32, #tpu.memory_space<vmem>>, vector<16x1xf32>
    %cst = arith.constant dense<0xFF800000> : vector<16xf32>
    %6 = vector.multi_reduction <maximumf>, %4, %cst [1] : vector<16x64xf32> to vector<16xf32>
    %7 = vector.shape_cast %6 : vector<16xf32> to vector<16x1xf32>
    %8 = arith.maximumf %5, %7 : vector<16x1xf32>
    %c0_5 = arith.constant 0 : index
    %c0_6 = arith.constant 0 : index
    %9 = vector.load %arg14[%c0_5, %c0_6] : memref<16x1xf32, #tpu.memory_space<vmem>>, vector<16x1xf32>
    tpu.vector_store %arg14[%c0_5, %c0_6], %8 {strides = array<i32>} : memref<16x1xf32, #tpu.memory_space<vmem>>, vector<16x1xf32>,
    %c0_7 = arith.constant 0 : index
    %c0_8 = arith.constant 0 : index
    %10 = vector.load %arg15[%c0_7, %c0_8] : memref<16x1xf32, #tpu.memory_space<vmem>>, vector<16x1xf32>
    %cst_9 = arith.constant dense<0.000000e+00> : vector<16xf32>
    %11 = vector.multi_reduction <add>, %4, %cst_9 [1] : vector<16x64xf32> to vector<16xf32>
    %12 = vector.shape_cast %11 : vector<16xf32> to vector<16x1xf32>
    %13 = arith.addf %10, %12 : vector<16x1xf32>
    %c0_10 = arith.constant 0 : index
    %c0_11 = arith.constant 0 : index
    %14 = vector.load %arg15[%c0_10, %c0_11] : memref<16x1xf32, #tpu.memory_space<vmem>>, vector<16x1xf32>
    tpu.vector_store %arg15[%c0_10, %c0_11], %13 {strides = array<i32>} : memref<16x1xf32, #tpu.memory_space<vmem>>, vector<16x1xf32>,
    %c0_12 = arith.constant 0 : index
    %c0_13 = arith.constant 0 : index
    %15 = vector.load %arg3[%c0_12, %c0_13] : memref<20x16xf32, #tpu.memory_space<vmem>>, vector<20x16xf32>
    %cst_14 = arith.constant dense<0.000000e+00> : vector<20x64xf32>
    %16 = tpu.matmul %15, %4, %cst_14 {dimension_numbers = #tpu.dot_dimension_numbers<[1], [0], [0], [1], [0, 0, 1, 1], [], []>} : vector<20x16xf32>, vector<16x64xf32>, vector<20x64xf32> -> vector<20x64xf32>
    %c0_15 = arith.constant 0 : index
    %c0_16 = arith.constant 0 : index
    %17 = vector.load %arg4[%c0_15, %c0_16] : memref<20x1xf32, #tpu.memory_space<vmem>>, vector<20x1xf32>
    %18 = vector.broadcast %17 : vector<20x1xf32> to vector<20x64xf32>
    %19 = arith.mulf %16, %18 : vector<20x64xf32>
    %c0_17 = arith.constant 0 : index
    %c0_18 = arith.constant 0 : index
    %20 = vector.load %arg5[%c0_17, %c0_18] : memref<20x1xf32, #tpu.memory_space<vmem>>, vector<20x1xf32>
    %21 = vector.broadcast %20 : vector<20x1xf32> to vector<20x64xf32>
    %22 = arith.addf %19, %21 : vector<20x64xf32>
    %cst_19 = arith.constant 0.000000e+00 : f32
    %23 = vector.broadcast %cst_19 : f32 to vector<20x64xf32>
    %24 = arith.maximumf %22, %23 : vector<20x64xf32>
    %25 = vector.extract_strided_slice %24 {offsets = [0, 0], sizes = [16, 64], strides = [1, 1]} : vector<20x64xf32> to vector<16x64xf32>
    %26 = vector.extract_strided_slice %24 {offsets = [16, 0], sizes = [4, 64], strides = [1, 1]} : vector<20x64xf32> to vector<4x64xf32>
    %c0_20 = arith.constant 0 : index
    %c0_21 = arith.constant 0 : index
    %27 = vector.load %arg6[%c0_20, %c0_21] : memref<16x16xf32, #tpu.memory_space<vmem>>, vector<16x16xf32>
    %cst_22 = arith.constant dense<0.000000e+00> : vector<16x64xf32>
    %28 = tpu.matmul %27, %25, %cst_22 {dimension_numbers = #tpu.dot_dimension_numbers<[1], [0], [0], [1], [0, 0, 1, 1], [], []>} : vector<16x16xf32>, vector<16x64xf32>, vector<16x64xf32> -> vector<16x64xf32>
    %c0_23 = arith.constant 0 : index
    %c0_24 = arith.constant 0 : index
    %29 = vector.load %arg7[%c0_23, %c0_24] : memref<16x1xf32, #tpu.memory_space<vmem>>, vector<16x1xf32>
    %30 = vector.broadcast %29 : vector<16x1xf32> to vector<16x64xf32>
    %31 = arith.mulf %28, %30 : vector<16x64xf32>
    %c0_25 = arith.constant 0 : index
    %c0_26 = arith.constant 0 : index
    %32 = vector.load %arg8[%c0_25, %c0_26] : memref<16x1xf32, #tpu.memory_space<vmem>>, vector<16x1xf32>
    %33 = vector.broadcast %32 : vector<16x1xf32> to vector<16x64xf32>
    %34 = arith.addf %31, %33 : vector<16x64xf32>
    %c0_27 = arith.constant 0 : index
    %c0_28 = arith.constant 0 : index
    %35 = vector.load %arg16[%c0_27, %c0_28] : memref<16x1xf32, #tpu.memory_space<vmem>>, vector<16x1xf32>
    %cst_29 = arith.constant dense<0xFF800000> : vector<16xf32>
    %36 = vector.multi_reduction <maximumf>, %34, %cst_29 [1] : vector<16x64xf32> to vector<16xf32>
    %37 = vector.shape_cast %36 : vector<16xf32> to vector<16x1xf32>
    %38 = arith.maximumf %35, %37 : vector<16x1xf32>
    %c0_30 = arith.constant 0 : index
    %c0_31 = arith.constant 0 : index
    %39 = vector.load %arg16[%c0_30, %c0_31] : memref<16x1xf32, #tpu.memory_space<vmem>>, vector<16x1xf32>
    tpu.vector_store %arg16[%c0_30, %c0_31], %38 {strides = array<i32>} : memref<16x1xf32, #tpu.memory_space<vmem>>, vector<16x1xf32>,
    %c0_32 = arith.constant 0 : index
    %c0_33 = arith.constant 0 : index
    %40 = vector.load %arg9[%c0_32, %c0_33] : memref<16x4xf32, #tpu.memory_space<vmem>>, vector<16x4xf32>
    %cst_34 = arith.constant dense<0.000000e+00> : vector<16x64xf32>
    %41 = tpu.matmul %40, %26, %cst_34 {dimension_numbers = #tpu.dot_dimension_numbers<[1], [0], [0], [1], [0, 0, 1, 1], [], []>} : vector<16x4xf32>, vector<4x64xf32>, vector<16x64xf32> -> vector<16x64xf32>
    %c0_35 = arith.constant 0 : index
    %c0_36 = arith.constant 0 : index
    %42 = vector.load %arg17[%c0_35, %c0_36] : memref<16x1xf32, #tpu.memory_space<vmem>>, vector<16x1xf32>
    %cst_37 = arith.constant dense<0xFF800000> : vector<16xf32>
    %43 = vector.multi_reduction <maximumf>, %41, %cst_37 [1] : vector<16x64xf32> to vector<16xf32>
    %44 = vector.shape_cast %43 : vector<16xf32> to vector<16x1xf32>
    %45 = arith.maximumf %42, %44 : vector<16x1xf32>
    %c0_38 = arith.constant 0 : index
    %c0_39 = arith.constant 0 : index
    %46 = vector.load %arg17[%c0_38, %c0_39] : memref<16x1xf32, #tpu.memory_space<vmem>>, vector<16x1xf32>
    tpu.vector_store %arg17[%c0_38, %c0_39], %45 {strides = array<i32>} : memref<16x1xf32, #tpu.memory_space<vmem>>, vector<16x1xf32>,
    %c0_i32_40 = arith.constant 0 : i32
    %47 = arith.cmpi eq, %arg1, %c0_i32_40 : i32
    %48 = arith.extui %47 : i1 to i32
    %c0_i32_41 = arith.constant 0 : i32
    %49 = arith.cmpi ne, %48, %c0_i32_41 : i32
    scf.if %49 {
      %c0_42 = arith.constant 0 : index
      %c0_43 = arith.constant 0 : index
      %50 = vector.load %arg15[%c0_42, %c0_43] : memref<16x1xf32, #tpu.memory_space<vmem>>, vector<16x1xf32>
      %cst_44 = arith.constant 1.562500e-02 : f32
      %51 = vector.broadcast %cst_44 : f32 to vector<16x1xf32>
      %52 = arith.mulf %50, %51 : vector<16x1xf32>
      %c0_45 = arith.constant 0 : index
      %c0_46 = arith.constant 0 : index
      %53 = vector.load %arg17[%c0_45, %c0_46] : memref<16x1xf32, #tpu.memory_space<vmem>>, vector<16x1xf32>
      %c0_47 = arith.constant 0 : index
      %c0_48 = arith.constant 0 : index
      %54 = vector.load %arg10[%c0_47, %c0_48] : memref<16x1xf32, #tpu.memory_space<vmem>>, vector<16x1xf32>
      %55 = arith.addf %53, %54 : vector<16x1xf32>
      %c0_49 = arith.constant 0 : index
      %c0_50 = arith.constant 0 : index
      %56 = vector.load %arg14[%c0_49, %c0_50] : memref<16x1xf32, #tpu.memory_space<vmem>>, vector<16x1xf32>
      %c0_51 = arith.constant 0 : index
      %c0_52 = arith.constant 0 : index
      %57 = vector.load %arg16[%c0_51, %c0_52] : memref<16x1xf32, #tpu.memory_space<vmem>>, vector<16x1xf32>
      %58 = tpu.concatenate %56, %52, %57, %55 in 1 : vector<16x1xf32>, vector<16x1xf32>, vector<16x1xf32>, vector<16x1xf32> -> vector<16x4xf32>
      %c0_53 = arith.constant 0 : index
      %c0_54 = arith.constant 0 : index
      %59 = vector.load %arg11[%c0_53, %c0_54] : memref<2x16xf32, #tpu.memory_space<vmem>>, vector<2x16xf32>
      %cst_55 = arith.constant dense<0.000000e+00> : vector<2x4xf32>
      %60 = tpu.matmul %59, %58, %cst_55 {dimension_numbers = #tpu.dot_dimension_numbers<[1], [0], [0], [1], [0, 0, 1, 1], [], []>} : vector<2x16xf32>, vector<16x4xf32>, vector<2x4xf32> -> vector<2x4xf32>
      %cst_56 = arith.constant 0.000000e+00 : f32
      %61 = vector.broadcast %cst_56 : f32 to vector<2x4xf32>
      %62 = arith.maximumf %60, %61 : vector<2x4xf32>
      %c0_57 = arith.constant 0 : index
      %c0_58 = arith.constant 0 : index
      %63 = vector.load %arg12[%c0_57, %c0_58] : memref<16x2xf32, #tpu.memory_space<vmem>>, vector<16x2xf32>
      %cst_59 = arith.constant dense<0.000000e+00> : vector<16x4xf32>
      %64 = tpu.matmul %63, %62, %cst_59 {dimension_numbers = #tpu.dot_dimension_numbers<[1], [0], [0], [1], [0, 0, 1, 1], [], []>} : vector<16x2xf32>, vector<2x4xf32>, vector<16x4xf32> -> vector<16x4xf32>
      %cst_60 = arith.constant dense<0.000000e+00> : vector<16xf32>
      %65 = vector.multi_reduction <add>, %64, %cst_60 [1] : vector<16x4xf32> to vector<16xf32>
      %66 = vector.shape_cast %65 : vector<16xf32> to vector<16x1xf32>
      %67 = arith.negf %66 : vector<16x1xf32>
      %68 = math.exp %67 : vector<16x1xf32>
      %cst_61 = arith.constant 1.000000e+00 : f32
      %69 = vector.broadcast %cst_61 : f32 to vector<16x1xf32>
      %70 = arith.addf %69, %68 : vector<16x1xf32>
      %71 = arith.divf %69, %70 : vector<16x1xf32>
      %c0_62 = arith.constant 0 : index
      %c0_63 = arith.constant 0 : index
      %c0_64 = arith.constant 0 : index
      %72 = vector.load %arg13[%c0_62, %c0_63, %c0_64] : memref<1x16x1xf32, #tpu.memory_space<vmem>>, vector<1x16x1xf32>
      %73 = vector.shape_cast %72 : vector<1x16x1xf32> to vector<16x1xf32>
      %74 = vector.shape_cast %71 : vector<16x1xf32> to vector<1x16x1xf32>
      tpu.vector_store %arg13[%c0_62, %c0_63, %c0_64], %74 {strides = array<i32>} : memref<1x16x1xf32, #tpu.memory_space<vmem>>, vector<1x16x1xf32>,
    } else {
    }
    return
  }
  func.func @transform_0(%arg0: i32, %arg1: i32) -> (i32, i32, i32) {
    %c0_i32 = arith.constant 0 : i32
    %c0_i32_0 = arith.constant 0 : i32
    return %arg0, %c0_i32, %arg1 : i32, i32, i32
  }
  func.func @transform_1(%arg0: i32, %arg1: i32) -> (i32, i32) {
    %c0_i32 = arith.constant 0 : i32
    %c0_i32_0 = arith.constant 0 : i32
    %c0_i32_1 = arith.constant 0 : i32
    return %c0_i32, %c0_i32_0 : i32, i32
  }
  func.func @transform_2(%arg0: i32, %arg1: i32) -> (i32, i32) {
    %c0_i32 = arith.constant 0 : i32
    %c0_i32_0 = arith.constant 0 : i32
    %c0_i32_1 = arith.constant 0 : i32
    return %c0_i32, %c0_i32_0 : i32, i32
  }
  func.func @transform_3(%arg0: i32, %arg1: i32) -> (i32, i32) {
    %c0_i32 = arith.constant 0 : i32
    %c0_i32_0 = arith.constant 0 : i32
    %c0_i32_1 = arith.constant 0 : i32
    return %c0_i32, %c0_i32_0 : i32, i32
  }
  func.func @transform_4(%arg0: i32, %arg1: i32) -> (i32, i32) {
    %c0_i32 = arith.constant 0 : i32
    %c0_i32_0 = arith.constant 0 : i32
    %c0_i32_1 = arith.constant 0 : i32
    return %c0_i32, %c0_i32_0 : i32, i32
  }
  func.func @transform_5(%arg0: i32, %arg1: i32) -> (i32, i32) {
    %c0_i32 = arith.constant 0 : i32
    %c0_i32_0 = arith.constant 0 : i32
    %c0_i32_1 = arith.constant 0 : i32
    return %c0_i32, %c0_i32_0 : i32, i32
  }
  func.func @transform_6(%arg0: i32, %arg1: i32) -> (i32, i32) {
    %c0_i32 = arith.constant 0 : i32
    %c0_i32_0 = arith.constant 0 : i32
    %c0_i32_1 = arith.constant 0 : i32
    return %c0_i32, %c0_i32_0 : i32, i32
  }
  func.func @transform_7(%arg0: i32, %arg1: i32) -> (i32, i32) {
    %c0_i32 = arith.constant 0 : i32
    %c0_i32_0 = arith.constant 0 : i32
    %c0_i32_1 = arith.constant 0 : i32
    return %c0_i32, %c0_i32_0 : i32, i32
  }
  func.func @transform_8(%arg0: i32, %arg1: i32) -> (i32, i32) {
    %c0_i32 = arith.constant 0 : i32
    %c0_i32_0 = arith.constant 0 : i32
    %c0_i32_1 = arith.constant 0 : i32
    return %c0_i32, %c0_i32_0 : i32, i32
  }
  func.func @transform_9(%arg0: i32, %arg1: i32) -> (i32, i32) {
    %c0_i32 = arith.constant 0 : i32
    %c0_i32_0 = arith.constant 0 : i32
    %c0_i32_1 = arith.constant 0 : i32
    return %c0_i32, %c0_i32_0 : i32, i32
  }
  func.func @transform_10(%arg0: i32, %arg1: i32) -> (i32, i32) {
    %c0_i32 = arith.constant 0 : i32
    %c0_i32_0 = arith.constant 0 : i32
    %c0_i32_1 = arith.constant 0 : i32
    return %c0_i32, %c0_i32_0 : i32, i32
  }
  func.func @transform_11(%arg0: i32, %arg1: i32) -> (i32, i32, i32) {
    %c0_i32 = arith.constant 0 : i32
    %c0_i32_0 = arith.constant 0 : i32
    %c0_i32_1 = arith.constant 0 : i32
    return %arg0, %c0_i32, %c0_i32_0 : i32, i32, i32
  }
}

</mosaic_0001>

<llo_original>
// kernel: tpu_custom_call.1
$region0: #{tpu_custom_call.1}
  #allocation0 [shape = 'u32[]', space=smem, size = 0x4, offset = 0x4, fixed_abs, tag = 'smem constant byte address 0x4 - core index']
  #allocation1 [shape = 'u32[144,128]{1,0:T(1,128)}', space=vmem, size = 0x12000, scoped, tag = 'internal scratch']
  #allocation2 [shape = 'f32[16,1]{1,0:T(8,128)}', space=vmem, size = 0x2000, scoped, tag = 'scratch operand']
  #allocation3 [shape = 'f32[16,1]{1,0:T(8,128)}', space=vmem, size = 0x2000, scoped, tag = 'scratch operand']
  #allocation4 [shape = 'f32[16,1]{1,0:T(8,128)}', space=vmem, size = 0x2000, scoped, tag = 'scratch operand']
  #allocation5 [shape = 'f32[16,1]{1,0:T(8,128)}', space=vmem, size = 0x2000, scoped, tag = 'scratch operand']
  %s0 = inlined_call_operand.vmem [shape: f32[2,16,64], index: 0, kind: input, shape index: {}]
  %s1 = inlined_call_operand.vmem [shape: f32[20,16], index: 1, kind: input, shape index: {}]
  %s2 = inlined_call_operand.vmem [shape: f32[20,1], index: 2, kind: input, shape index: {}]
  %s3 = inlined_call_operand.vmem [shape: f32[20,1], index: 3, kind: input, shape index: {}]
  %s4 = inlined_call_operand.vmem [shape: f32[16,16], index: 4, kind: input, shape index: {}]
  %s5 = inlined_call_operand.vmem [shape: f32[16,1], index: 5, kind: input, shape index: {}]
  %s6 = inlined_call_operand.vmem [shape: f32[16,1], index: 6, kind: input, shape index: {}]
  %s7 = inlined_call_operand.vmem [shape: f32[16,4], index: 7, kind: input, shape index: {}]
  %s8 = inlined_call_operand.vmem [shape: f32[16,1], index: 8, kind: input, shape index: {}]
  %s9 = inlined_call_operand.vmem [shape: f32[2,16], index: 9, kind: input, shape index: {}]
  %s10 = inlined_call_operand.vmem [shape: f32[16,2], index: 10, kind: input, shape index: {}]
  %s11 = inlined_call_operand.vmem [shape: f32[2,16,1], index: 11, kind: output, shape index: {}]
  %s12 = sld [smem:[#allocation0]]
  $region85: #{tpu_custom_call.1} parent=0
    _
  %s14 = ssub.s32 1, %s12
  %s15 = scalar_select 0, %s14, %s12
  loop: start=0, step=1, limit=4
  $region2: #{tpu_custom_call.1} parent=0 // loop_pre_header
    _
  $region3: #{tpu_custom_call.1} parent=0 // loop_header
    %s17 = sphi 0, %s21
    %p18 = scmp.ge.s32.totalorder %s17, 4
    %s24 = sphi 0, %s36
    %s25 = sphi 0, %s32
    %s26 = sphi 0, %s24
    %s27 = sphi 0, %s25
    %s28 = sphi 0, %s26
    %s29 = sphi 0, %s27
    %s41 = sphi 0, %s43
    %s44 = sphi 0, %s41
    %s45 = sphi 0, %s44
    %s61 = sphi 0, %s45
    %s65 = sphi 0, %s65
    %s67 = sphi 0, %s65
    %s68 = sphi 0, %s67
    %s82 = sphi 0, %s68
    %s86 = sphi 0, %s86
    %s88 = sphi 0, %s86
    %s89 = sphi 0, %s88
    %s103 = sphi 0, %s89
    %s107 = sphi 0, %s107
    %s109 = sphi 0, %s107
    %s110 = sphi 0, %s109
    %s124 = sphi 0, %s110
    %s128 = sphi 0, %s128
    %s130 = sphi 0, %s128
    %s131 = sphi 0, %s130
    %s145 = sphi 0, %s131
    %s149 = sphi 0, %s149
    %s151 = sphi 0, %s149
    %s152 = sphi 0, %s151
    %s166 = sphi 0, %s152
    %s170 = sphi 0, %s170
    %s172 = sphi 0, %s170
    %s173 = sphi 0, %s172
    %s187 = sphi 0, %s173
    %s191 = sphi 0, %s191
    %s193 = sphi 0, %s191
    %s194 = sphi 0, %s193
    %s208 = sphi 0, %s194
    %s212 = sphi 0, %s212
    %s214 = sphi 0, %s212
    %s215 = sphi 0, %s214
    %s229 = sphi 0, %s215
    %s233 = sphi 0, %s233
    %s235 = sphi 0, %s233
    %s236 = sphi 0, %s235
    %s250 = sphi 0, %s236
    %s254 = sphi 0, %s254
    %s256 = sphi 0, %s254
    %s257 = sphi 0, %s256
    %s271 = sphi 0, %s257
    %s277 = sphi 0, %s279
    %s280 = sphi 0, %s277
    %s281 = sphi 0, %s280
    %s297 = sphi 0, %s281
  $region4: #{tpu_custom_call.1} parent=0 // loop_header_branch
    %20 = sbr.rel (%p18) target = $region8
  $region5: #{tpu_custom_call.1} parent=0 // loop_body
    %s22 = ssub.s32 %s17, 1
    %s23 = ssub.s32 %s17, 2
    %s30 = sadd.s32 1, %s25
    %p31 = scmp.ge.s32.totalorder %s30, 1
    %s32 = scalar_select %p31, 0, %s30
    %s33 = sadd.s32 1, %s24
    %s34 = scalar_select %p31, %s33, %s24
    %p35 = scmp.ge.s32.totalorder %s34, 2
    %s36 = scalar_select %p35, 0, %s34
    %s37 = ssub.s32 %s24, %s36
    %s38 = ssub.s32 %s25, %s32
    %s39 = sor.u32 %s37, %s38
    %p40 = scmp.eq.s32.totalorder %s39, 0
    %s42 = sadd.s32 %s41, 1
    %s43 = scalar_select %p40, %s41, %s42
    %p46 = pneg %p40
    %p47 = scmp.eq.s32.totalorder %s17, 1
    %p48 = por %p46, %p47
    %p49 = scmp.ne.s32.totalorder %s41, %s44
    %p50 = scmp.eq.s32.totalorder %s17, 0
    %p51 = por %p49, %p50
    %p52 = scmp.ne.s32.totalorder %s41, %s44
    %p53 = scmp.eq.s32.totalorder %s22, 1
    %p54 = por %p52, %p53
    %p55 = scmp.ne.s32.totalorder %s44, %s45
    %p56 = scmp.eq.s32.totalorder %s22, 0
    %p57 = por %p55, %p56
    %p58 = scmp.ne.s32.totalorder %s44, %s45
    %p59 = scmp.eq.s32.totalorder %s23, 1
    %p60 = por %p58, %p59
    %p62 = scmp.ne.s32.totalorder %s45, %s61
    %p63 = scmp.eq.s32.totalorder %s23, 0
    %p64 = por %p62, %p63
    %s66 = sadd.s32 %s65, 1
    %p69 = scmp.eq.s32.totalorder %s17, 1
    %p70 = scmp.ne.s32.totalorder %s65, %s67
    %p71 = scmp.eq.s32.totalorder %s17, 0
    %p72 = por %p70, %p71
    %p73 = scmp.ne.s32.totalorder %s65, %s67
    %p74 = scmp.eq.s32.totalorder %s22, 1
    %p75 = por %p73, %p74
    %p76 = scmp.ne.s32.totalorder %s67, %s68
    %p77 = scmp.eq.s32.totalorder %s22, 0
    %p78 = por %p76, %p77
    %p79 = scmp.ne.s32.totalorder %s67, %s68
    %p80 = scmp.eq.s32.totalorder %s23, 1
    %p81 = por %p79, %p80
    %p83 = scmp.ne.s32.totalorder %s68, %s82
    %p84 = scmp.eq.s32.totalorder %s23, 0
    %p85 = por %p83, %p84
    %s87 = sadd.s32 %s86, 1
    %p90 = scmp.eq.s32.totalorder %s17, 1
    %p91 = scmp.ne.s32.totalorder %s86, %s88
    %p92 = scmp.eq.s32.totalorder %s17, 0
    %p93 = por %p91, %p92
    %p94 = scmp.ne.s32.totalorder %s86, %s88
    %p95 = scmp.eq.s32.totalorder %s22, 1
    %p96 = por %p94, %p95
    %p97 = scmp.ne.s32.totalorder %s88, %s89
    %p98 = scmp.eq.s32.totalorder %s22, 0
    %p99 = por %p97, %p98
    %p100 = scmp.ne.s32.totalorder %s88, %s89
    %p101 = scmp.eq.s32.totalorder %s23, 1
    %p102 = por %p100, %p101
    %p104 = scmp.ne.s32.totalorder %s89, %s103
    %p105 = scmp.eq.s32.totalorder %s23, 0
    %p106 = por %p104, %p105
    %s108 = sadd.s32 %s107, 1
    %p111 = scmp.eq.s32.totalorder %s17, 1
    %p112 = scmp.ne.s32.totalorder %s107, %s109
    %p113 = scmp.eq.s32.totalorder %s17, 0
    %p114 = por %p112, %p113
    %p115 = scmp.ne.s32.totalorder %s107, %s109
    %p116 = scmp.eq.s32.totalorder %s22, 1
    %p117 = por %p115, %p116
    %p118 = scmp.ne.s32.totalorder %s109, %s110
    %p119 = scmp.eq.s32.totalorder %s22, 0
    %p120 = por %p118, %p119
    %p121 = scmp.ne.s32.totalorder %s109, %s110
    %p122 = scmp.eq.s32.totalorder %s23, 1
    %p123 = por %p121, %p122
    %p125 = scmp.ne.s32.totalorder %s110, %s124
    %p126 = scmp.eq.s32.totalorder %s23, 0
    %p127 = por %p125, %p126
    %s129 = sadd.s32 %s128, 1
    %p132 = scmp.eq.s32.totalorder %s17, 1
    %p133 = scmp.ne.s32.totalorder %s128, %s130
    %p134 = scmp.eq.s32.totalorder %s17, 0
    %p135 = por %p133, %p134
    %p136 = scmp.ne.s32.totalorder %s128, %s130
    %p137 = scmp.eq.s32.totalorder %s22, 1
    %p138 = por %p136, %p137
    %p139 = scmp.ne.s32.totalorder %s130, %s131
    %p140 = scmp.eq.s32.totalorder %s22, 0
    %p141 = por %p139, %p140
    %p142 = scmp.ne.s32.totalorder %s130, %s131
    %p143 = scmp.eq.s32.totalorder %s23, 1
    %p144 = por %p142, %p143
    %p146 = scmp.ne.s32.totalorder %s131, %s145
    %p147 = scmp.eq.s32.totalorder %s23, 0
    %p148 = por %p146, %p147
    %s150 = sadd.s32 %s149, 1
    %p153 = scmp.eq.s32.totalorder %s17, 1
    %p154 = scmp.ne.s32.totalorder %s149, %s151
    %p155 = scmp.eq.s32.totalorder %s17, 0
    %p156 = por %p154, %p155
    %p157 = scmp.ne.s32.totalorder %s149, %s151
    %p158 = scmp.eq.s32.totalorder %s22, 1
    %p159 = por %p157, %p158
    %p160 = scmp.ne.s32.totalorder %s151, %s152
    %p161 = scmp.eq.s32.totalorder %s22, 0
    %p162 = por %p160, %p161
    %p163 = scmp.ne.s32.totalorder %s151, %s152
    %p164 = scmp.eq.s32.totalorder %s23, 1
    %p165 = por %p163, %p164
    %p167 = scmp.ne.s32.totalorder %s152, %s166
    %p168 = scmp.eq.s32.totalorder %s23, 0
    %p169 = por %p167, %p168
    %s171 = sadd.s32 %s170, 1
    %p174 = scmp.eq.s32.totalorder %s17, 1
    %p175 = scmp.ne.s32.totalorder %s170, %s172
    %p176 = scmp.eq.s32.totalorder %s17, 0
    %p177 = por %p175, %p176
    %p178 = scmp.ne.s32.totalorder %s170, %s172
    %p179 = scmp.eq.s32.totalorder %s22, 1
    %p180 = por %p178, %p179
    %p181 = scmp.ne.s32.totalorder %s172, %s173
    %p182 = scmp.eq.s32.totalorder %s22, 0
    %p183 = por %p181, %p182
    %p184 = scmp.ne.s32.totalorder %s172, %s173
    %p185 = scmp.eq.s32.totalorder %s23, 1
    %p186 = por %p184, %p185
    %p188 = scmp.ne.s32.totalorder %s173, %s187
    %p189 = scmp.eq.s32.totalorder %s23, 0
    %p190 = por %p188, %p189
    %s192 = sadd.s32 %s191, 1
    %p195 = scmp.eq.s32.totalorder %s17, 1
    %p196 = scmp.ne.s32.totalorder %s191, %s193
    %p197 = scmp.eq.s32.totalorder %s17, 0
    %p198 = por %p196, %p197
    %p199 = scmp.ne.s32.totalorder %s191, %s193
    %p200 = scmp.eq.s32.totalorder %s22, 1
    %p201 = por %p199, %p200
    %p202 = scmp.ne.s32.totalorder %s193, %s194
    %p203 = scmp.eq.s32.totalorder %s22, 0
    %p204 = por %p202, %p203
    %p205 = scmp.ne.s32.totalorder %s193, %s194
    %p206 = scmp.eq.s32.totalorder %s23, 1
    %p207 = por %p205, %p206
    %p209 = scmp.ne.s32.totalorder %s194, %s208
    %p210 = scmp.eq.s32.totalorder %s23, 0
    %p211 = por %p209, %p210
    %s213 = sadd.s32 %s212, 1
    %p216 = scmp.eq.s32.totalorder %s17, 1
    %p217 = scmp.ne.s32.totalorder %s212, %s214
    %p218 = scmp.eq.s32.totalorder %s17, 0
    %p219 = por %p217, %p218
    %p220 = scmp.ne.s32.totalorder %s212, %s214
    %p221 = scmp.eq.s32.totalorder %s22, 1
    %p222 = por %p220, %p221
    %p223 = scmp.ne.s32.totalorder %s214, %s215
    %p224 = scmp.eq.s32.totalorder %s22, 0
    %p225 = por %p223, %p224
    %p226 = scmp.ne.s32.totalorder %s214, %s215
    %p227 = scmp.eq.s32.totalorder %s23, 1
    %p228 = por %p226, %p227
    %p230 = scmp.ne.s32.totalorder %s215, %s229
    %p231 = scmp.eq.s32.totalorder %s23, 0
    %p232 = por %p230, %p231
    %s234 = sadd.s32 %s233, 1
    %p237 = scmp.eq.s32.totalorder %s17, 1
    %p238 = scmp.ne.s32.totalorder %s233, %s235
    %p239 = scmp.eq.s32.totalorder %s17, 0
    %p240 = por %p238, %p239
    %p241 = scmp.ne.s32.totalorder %s233, %s235
    %p242 = scmp.eq.s32.totalorder %s22, 1
    %p243 = por %p241, %p242
    %p244 = scmp.ne.s32.totalorder %s235, %s236
    %p245 = scmp.eq.s32.totalorder %s22, 0
    %p246 = por %p244, %p245
    %p247 = scmp.ne.s32.totalorder %s235, %s236
    %p248 = scmp.eq.s32.totalorder %s23, 1
    %p249 = por %p247, %p248
    %p251 = scmp.ne.s32.totalorder %s236, %s250
    %p252 = scmp.eq.s32.totalorder %s23, 0
    %p253 = por %p251, %p252
    %s255 = sadd.s32 %s254, 1
    %p258 = scmp.eq.s32.totalorder %s17, 1
    %p259 = scmp.ne.s32.totalorder %s254, %s256
    %p260 = scmp.eq.s32.totalorder %s17, 0
    %p261 = por %p259, %p260
    %p262 = scmp.ne.s32.totalorder %s254, %s256
    %p263 = scmp.eq.s32.totalorder %s22, 1
    %p264 = por %p262, %p263
    %p265 = scmp.ne.s32.totalorder %s256, %s257
    %p266 = scmp.eq.s32.totalorder %s22, 0
    %p267 = por %p265, %p266
    %p268 = scmp.ne.s32.totalorder %s256, %s257
    %p269 = scmp.eq.s32.totalorder %s23, 1
    %p270 = por %p268, %p269
    %p272 = scmp.ne.s32.totalorder %s257, %s271
    %p273 = scmp.eq.s32.totalorder %s23, 0
    %p274 = por %p272, %p273
    %s275 = ssub.s32 %s24, %s36
    %p276 = scmp.eq.s32.totalorder %s275, 0
    %s278 = sadd.s32 %s277, 1
    %s279 = scalar_select %p276, %s277, %s278
    %p282 = pneg %p276
    %p283 = scmp.eq.s32.totalorder %s17, 1
    %p284 = por %p282, %p283
    %p285 = scmp.ne.s32.totalorder %s277, %s280
    %p286 = scmp.eq.s32.totalorder %s17, 0
    %p287 = por %p285, %p286
    %p288 = scmp.ne.s32.totalorder %s277, %s280
    %p289 = scmp.eq.s32.totalorder %s22, 1
    %p290 = por %p288, %p289
    %p291 = scmp.ne.s32.totalorder %s280, %s281
    %p292 = scmp.eq.s32.totalorder %s22, 0
    %p293 = por %p291, %p292
    %p294 = scmp.ne.s32.totalorder %s280, %s281
    %p295 = scmp.eq.s32.totalorder %s23, 1
    %p296 = por %p294, %p295
    %p298 = scmp.ne.s32.totalorder %s281, %s297
    %p299 = scmp.eq.s32.totalorder %s23, 0
    %p300 = por %p298, %p299
    %p301 = scmp.le.s32.totalorder 1, %s17
    %p302 = scmp.lt.s32.totalorder %s17, 3
    %p303 = pnand %p301, %p302
    %p304 = pneg %p303
    // Predicated region
    $region9: #{tpu_custom_call.1} parent=5 // pred_check
      _
    $region10: #{tpu_custom_call.1} parent=5 // pred_check_branch
      %306 = sbr.rel (%p303) target = $region12
    $region11: #{tpu_custom_call.1} parent=5 // pred_region
      %s307 = ssub.s32 %s17, 1
      // Predicated region
      $region13: #{tpu_custom_call.1} parent=11 // pred_check
        %p308 = pneg %p78
      $region14: #{tpu_custom_call.1} parent=11 // pred_check_branch
        %310 = sbr.rel (%p308) target = $region16
      $region15: #{tpu_custom_call.1} parent=11 // pred_region
        _
      $region16: #{tpu_custom_call.1} parent=11 // pred_fallthru
        _
      // Predicated region
      $region17: #{tpu_custom_call.1} parent=11 // pred_check
        %p311 = pneg %p99
      $region18: #{tpu_custom_call.1} parent=11 // pred_check_branch
        %313 = sbr.rel (%p311) target = $region20
      $region19: #{tpu_custom_call.1} parent=11 // pred_region
        _
      $region20: #{tpu_custom_call.1} parent=11 // pred_fallthru
        _
      // Predicated region
      $region21: #{tpu_custom_call.1} parent=11 // pred_check
        %p314 = pneg %p120
      $region22: #{tpu_custom_call.1} parent=11 // pred_check_branch
        %316 = sbr.rel (%p314) target = $region24
      $region23: #{tpu_custom_call.1} parent=11 // pred_region
        _
      $region24: #{tpu_custom_call.1} parent=11 // pred_fallthru
        _
      // Predicated region
      $region25: #{tpu_custom_call.1} parent=11 // pred_check
        %p317 = pneg %p141
      $region26: #{tpu_custom_call.1} parent=11 // pred_check_branch
        %319 = sbr.rel (%p317) target = $region28
      $region27: #{tpu_custom_call.1} parent=11 // pred_region
        _
      $region28: #{tpu_custom_call.1} parent=11 // pred_fallthru
        _
      // Predicated region
      $region29: #{tpu_custom_call.1} parent=11 // pred_check
        %p320 = pneg %p162
      $region30: #{tpu_custom_call.1} parent=11 // pred_check_branch
        %322 = sbr.rel (%p320) target = $region32
      $region31: #{tpu_custom_call.1} parent=11 // pred_region
        _
      $region32: #{tpu_custom_call.1} parent=11 // pred_fallthru
        _
      // Predicated region
      $region33: #{tpu_custom_call.1} parent=11 // pred_check
        %p323 = pneg %p183
      $region34: #{tpu_custom_call.1} parent=11 // pred_check_branch
        %325 = sbr.rel (%p323) target = $region36
      $region35: #{tpu_custom_call.1} parent=11 // pred_region
        _
      $region36: #{tpu_custom_call.1} parent=11 // pred_fallthru
        _
      // Predicated region
      $region37: #{tpu_custom_call.1} parent=11 // pred_check
        %p326 = pneg %p204
      $region38: #{tpu_custom_call.1} parent=11 // pred_check_branch
        %328 = sbr.rel (%p326) target = $region40
      $region39: #{tpu_custom_call.1} parent=11 // pred_region
        _
      $region40: #{tpu_custom_call.1} parent=11 // pred_fallthru
        _
      // Predicated region
      $region41: #{tpu_custom_call.1} parent=11 // pred_check
        %p329 = pneg %p225
      $region42: #{tpu_custom_call.1} parent=11 // pred_check_branch
        %331 = sbr.rel (%p329) target = $region44
      $region43: #{tpu_custom_call.1} parent=11 // pred_region
        _
      $region44: #{tpu_custom_call.1} parent=11 // pred_fallthru
        _
      // Predicated region
      $region45: #{tpu_custom_call.1} parent=11 // pred_check
        %p332 = pneg %p246
      $region46: #{tpu_custom_call.1} parent=11 // pred_check_branch
        %334 = sbr.rel (%p332) target = $region48
      $region47: #{tpu_custom_call.1} parent=11 // pred_region
        _
      $region48: #{tpu_custom_call.1} parent=11 // pred_fallthru
        _
      // Predicated region
      $region49: #{tpu_custom_call.1} parent=11 // pred_check
        %p335 = pneg %p267
      $region50: #{tpu_custom_call.1} parent=11 // pred_check_branch
        %337 = sbr.rel (%p335) target = $region52
      $region51: #{tpu_custom_call.1} parent=11 // pred_region
        _
      $region52: #{tpu_custom_call.1} parent=11 // pred_fallthru
        _
    $region12: #{tpu_custom_call.1} parent=5 // pred_fallthru
      _
    %p338 = scmp.lt.s32.totalorder %s17, 2
    // Predicated region
    $region53: #{tpu_custom_call.1} parent=5 // pred_check
      %p339 = pneg %p338
    $region54: #{tpu_custom_call.1} parent=5 // pred_check_branch
      %341 = sbr.rel (%p339) target = $region56
    $region55: #{tpu_custom_call.1} parent=5 // pred_region
      // Predicated region
      $region57: #{tpu_custom_call.1} parent=55 // pred_check
        %p342 = pneg %p51
      $region58: #{tpu_custom_call.1} parent=55 // pred_check_branch
        %344 = sbr.rel (%p342) target = $region60
      $region59: #{tpu_custom_call.1} parent=55 // pred_region
        %p345 = scmp.lt.s32.totalorder %s24, 1
        %s346 = scalar_select %p345, %s24, 1
        %p347 = scmp.lt.s32.totalorder %s25, 0
        %s348 = scalar_select %p347, %s25, 0
        %s349 = smul.addr %s346, 2
        %s350 = sadd.s32 %s348, %s349
        %s351 = smul.addr %s350, 8
        %s352 = scalar_lea.vmem %s0, %s351
      $region60: #{tpu_custom_call.1} parent=55 // pred_fallthru
        _
    $region56: #{tpu_custom_call.1} parent=5 // pred_fallthru
      _
    %p353 = scmp.le.s32.totalorder 1, %s17
    %p354 = scmp.lt.s32.totalorder %s17, 3
    %p355 = pnand %p353, %p354
    %p356 = pneg %p355
    // Predicated region
    $region61: #{tpu_custom_call.1} parent=5 // pred_check
      _
    $region62: #{tpu_custom_call.1} parent=5 // pred_check_branch
      %358 = sbr.rel (%p355) target = $region64
    $region63: #{tpu_custom_call.1} parent=5 // pred_region
      %s359 = ssub.s32 %s17, 1
      %p360 = scmp.lt.s32.totalorder %s26, 1
      %s361 = scalar_select %p360, %s26, 1
      %p362 = scmp.lt.s32.totalorder %s27, 0
      %s363 = scalar_select %p362, %s27, 0
      %s364 = smul.addr %s361, 2
      %s365 = sadd.s32 %s363, %s364
      %s366 = smul.addr %s365, 8
      %s367 = scalar_lea.vmem %s0, %s366
      %p368 = pneg %p57
      %p369 = pneg %p54
      %p370 = pneg %p78
      %p371 = pneg %p75
      %p372 = pneg %p99
      %p373 = pneg %p96
      %p374 = pneg %p120
      %p375 = pneg %p117
      %p376 = pneg %p141
      %p377 = pneg %p138
      %p378 = pneg %p162
      %p379 = pneg %p159
      %p380 = pneg %p183
      %p381 = pneg %p180
      %p382 = pneg %p204
      %p383 = pneg %p201
      %p384 = pneg %p225
      %p385 = pneg %p222
      %p386 = pneg %p246
      %p387 = pneg %p243
      %p388 = pneg %p267
      %p389 = pneg %p264
      %p390 = pneg %p293
      %p391 = pneg %p290
      %p392 = scmp.lt.s32.totalorder %s26, 1
      %s393 = scalar_select %p392, %s26, 1
      %s394 = smul.addr %s393, 2
      %s395 = smul.addr %s394, 8
      %s396 = scalar_lea.vmem %s11, %s395
      %p397 = scmp.lt.s32.totalorder %s26, 1
      %s398 = scalar_select %p397, %s26, 1
      %p399 = scmp.lt.s32.totalorder %s27, 0
      %s400 = scalar_select %p399, %s27, 0
      %s401 = smul.addr %s398, 2
      %s402 = sadd.s32 %s400, %s401
      %s403 = smul.addr %s402, 8
      %s404 = scalar_lea.vmem %s0, %s403
      %p405 = scmp.lt.s32.totalorder %s26, 1
      %s406 = scalar_select %p405, %s26, 1
      %s407 = smul.addr %s406, 2
      %s408 = smul.addr %s407, 8
      %s409 = scalar_lea.vmem %s11, %s408
      %p410 = scmp.eq.s32.totalorder %s27, 0
      // Predicated region
      $region65: #{tpu_custom_call.1} parent=63 // pred_check
        %p411 = pneg %p410
      $region66: #{tpu_custom_call.1} parent=63 // pred_check_branch
        %413 = sbr.rel (%p411) target = $region68
      $region67: #{tpu_custom_call.1} parent=63 // pred_region
        %vm414 = vcmask 7168
        %415 = vst.msk [vmem:[#allocation2] sm:$0xff] %vm414, -inf
        %416 = vst.msk [vmem:[#allocation2 + $0x8] sm:$0xff] %vm414, -inf
        %417 = vst.msk [vmem:[#allocation4] sm:$0xff] %vm414, -inf
        %418 = vst.msk [vmem:[#allocation4 + $0x8] sm:$0xff] %vm414, -inf
        %419 = vst.msk [vmem:[#allocation5] sm:$0xff] %vm414, -inf
        %420 = vst.msk [vmem:[#allocation5 + $0x8] sm:$0xff] %vm414, -inf
        %421 = vst.msk [vmem:[#allocation3] sm:$0xff] %vm414, 0.0
        %422 = vst.msk [vmem:[#allocation3 + $0x8] sm:$0xff] %vm414, 0.0
      $region68: #{tpu_custom_call.1} parent=63 // pred_fallthru
        _
      %v423 = vld [vmem:[%s404] sm:$0xff]
      %v424 = vld [vmem:[%s404 + $0x8] sm:$0xff]
      %v425 = vld [vmem:[#allocation2] sm:$0xff]
      %v426 = vld [vmem:[#allocation2 + $0x8] sm:$0xff]
      %vm427 = vcmask 523264
      %v428 = vsel %vm427, %v423, -inf
      %429 = vmax.xlane.f32.xlu0 %v428
      %v430 = vpop.xlane.xlu0 %429
      %v431 = vsel %vm427, %v424, -inf
      %432 = vmax.xlane.f32.xlu0 %v431
      %v433 = vpop.xlane.xlu0 %432
      %v434 = vmax.f32 %v425, %v430
      %v435 = vmax.f32 %v426, %v433
      %vm436 = vcmask 7168
      %437 = vst.msk [vmem:[#allocation2] sm:$0xff] %vm436, %v434
      %438 = vst.msk [vmem:[#allocation2 + $0x8] sm:$0xff] %vm436, %v435
      %v439 = vld [vmem:[#allocation3] sm:$0xff]
      %v440 = vld [vmem:[#allocation3 + $0x8] sm:$0xff]
      %v441 = vsel %vm427, %v423, 0.0
      %442 = vadd.xlane.f32.xlu0 %v441
      %v443 = vpop.xlane.xlu0 %442
      %v444 = vsel %vm427, %v424, 0.0
      %445 = vadd.xlane.f32.xlu0 %v444
      %v446 = vpop.xlane.xlu0 %445
      %v447 = vadd.f32 %v439, %v443
      %v448 = vadd.f32 %v440, %v446
      %449 = vst.msk [vmem:[#allocation3] sm:$0xff] %vm436, %v447
      %450 = vst.msk [vmem:[#allocation3 + $0x8] sm:$0xff] %vm436, %v448
      %v451 = vld [vmem:[%s1] sm:$0xff]
      %v452 = vld [vmem:[%s1 + $0x8] sm:$0xff]
      %v453 = vld [vmem:[%s1 + $0x10] sm:$0xf]
      %vm454 = vcmask 130048
      %v456 = vsel %vm454, %v451, 0
      %v459 = vsel %vm454, %v452, 0
      %v462 = vsel %vm454, %v453, 0
      %464 = vmatprep.subr.mxu0 0.0
      %465 = vmatpush1.msra.mxu0 %v423
      %466 = vmatprep.subr.mxu0 0.0
      %467 = vmatpush1.msra.mxu0 %v424
      %468 = vmatprep.subr.mxu0 0.0
      %469 = vmatpush1.msra.mxu0 0.0
      %470 = vmatprep.subr.mxu0 0.0
      %471 = vmatpush1.msra.mxu0 0.0
      %472 = vmatprep.subr.mxu0 0.0
      %473 = vmatpush1.msra.mxu0 0.0
      %474 = vmatprep.subr.mxu0 0.0
      %475 = vmatpush1.msra.mxu0 0.0
      %476 = vmatprep.subr.mxu0 0.0
      %477 = vmatpush1.msra.mxu0 0.0
      %478 = vmatprep.subr.mxu0 0.0
      %479 = vmatpush1.msra.mxu0 0.0
      %480 = vmatprep.subr.mxu0 0.0
      %481 = vmatpush1.msra.mxu0 0.0
      %482 = vmatprep.subr.mxu0 0.0
      %483 = vmatpush1.msra.mxu0 0.0
      %484 = vmatprep.subr.mxu0 0.0
      %485 = vmatpush1.msra.mxu0 0.0
      %486 = vmatprep.subr.mxu0 0.0
      %487 = vmatpush1.msra.mxu0 0.0
      %488 = vmatprep.subr.mxu0 0.0
      %489 = vmatpush1.msra.mxu0 0.0
      %490 = vmatprep.subr.mxu0 0.0
      %491 = vmatpush1.msra.mxu0 0.0
      %492 = vmatprep.subr.mxu0 0.0
      %493 = vmatpush1.msra.mxu0 0.0
      %494 = vmatprep.subr.mxu0 0.0
      %495 = vmatpush1.msra.mxu0 0.0
      %496 = vmatprep.subr.mxu0 0.0
      %497 = vmatpush1.msra.mxu0 0.0
      %498 = vmatprep.subr.mxu0 0.0
      %499 = vmatpush1.msra.mxu0 0.0
      %500 = vmatprep.subr.mxu0 0.0
      %501 = vmatpush1.msra.mxu0 0.0
      %502 = vmatprep.subr.mxu0 0.0
      %503 = vmatpush1.msra.mxu0 0.0
      %504 = vmatprep.subr.mxu0 0.0
      %505 = vmatpush1.msra.mxu0 0.0
      %506 = vmatprep.subr.mxu0 0.0
      %507 = vmatpush1.msra.mxu0 0.0
      %508 = vmatprep.subr.mxu0 0.0
      %509 = vmatpush1.msra.mxu0 0.0
      %510 = vmatprep.subr.mxu0 0.0
      %511 = vmatpush1.msra.mxu0 0.0
      %512 = vmatprep.subr.mxu0 0.0
      %513 = vmatpush1.msra.mxu0 0.0
      %514 = vmatprep.subr.mxu0 0.0
      %515 = vmatpush1.msra.mxu0 0.0
      %516 = vmatprep.subr.mxu0 0.0
      %517 = vmatpush1.msra.mxu0 0.0
      %518 = vmatprep.subr.mxu0 0.0
      %519 = vmatpush1.msra.mxu0 0.0
      %520 = vmatprep.subr.mxu0 0.0
      %521 = vmatpush1.msra.mxu0 0.0
      %522 = vmatprep.subr.mxu0 0.0
      %523 = vmatpush1.msra.mxu0 0.0
      %524 = vmatprep.subr.mxu0 0.0
      %525 = vmatpush1.msra.mxu0 0.0
      %526 = vmatprep.subr.mxu0 0.0
      %527 = vmatpush1.msra.mxu0 0.0
      %528 = vmatprep.mubr.f32.mxu0 0.0
      %529 = vmatmul.mubr.f32.gmra.mrb[0].mxu0 %v456
      %v530 = vpop.f32.mrb[0].mxu0
      %v531 = vadd.f32 0.0, %v530
      %v532 = vpop.f32.mrb[0].mxu0
      %533 = vmatprep.mubr.f32.mxu0 0.0
      %534 = vmatmul.mubr.f32.gmra.mrb[0].mxu0 %v459
      %v535 = vpop.f32.mrb[0].mxu0
      %v536 = vadd.f32 0.0, %v535
      %v537 = vpop.f32.mrb[0].mxu0
      %538 = vmatprep.mubr.f32.mxu0 0.0
      %539 = vmatmul.mubr.f32.gmra.mrb[0].mxu0 %v462
      %v540 = vpop.f32.mrb[0].mxu0
      %v541 = vadd.f32 0.0, %v540
      %v542 = vpop.f32.mrb[0].mxu0
      %543 = vdwg.mxu0
      %v544 = vld [vmem:[%s2] sm:$0xff]
      %v545 = vld [vmem:[%s2 + $0x8] sm:$0xff]
      %v546 = vld [vmem:[%s2 + $0x10] sm:$0xf]
      %548 = vset.pattern.permute.xlu0 0
      %549 = vperm.xlu0 %548, %v544
      %v550 = vpop.permute.xlu0 %549
      %553 = vset.pattern.permute.xlu0 0
      %554 = vperm.xlu0 %553, %v545
      %v555 = vpop.permute.xlu0 %554
      %558 = vset.pattern.permute.xlu0 0
      %559 = vperm.xlu0 %558, %v546
      %v560 = vpop.permute.xlu0 %559
      %v562 = vmul.f32 %v531, %v550
      %v563 = vmul.f32 %v536, %v555
      %v564 = vmul.f32 %v541, %v560
      %v565 = vld [vmem:[%s3] sm:$0xff]
      %v566 = vld [vmem:[%s3 + $0x8] sm:$0xff]
      %v567 = vld [vmem:[%s3 + $0x10] sm:$0xf]
      %569 = vset.pattern.permute.xlu0 0
      %570 = vperm.xlu0 %569, %v565
      %v571 = vpop.permute.xlu0 %570
      %574 = vset.pattern.permute.xlu0 0
      %575 = vperm.xlu0 %574, %v566
      %v576 = vpop.permute.xlu0 %575
      %579 = vset.pattern.permute.xlu0 0
      %580 = vperm.xlu0 %579, %v567
      %v581 = vpop.permute.xlu0 %580
      %v583 = vadd.f32 %v562, %v571
      %v584 = vadd.f32 %v563, %v576
      %v585 = vadd.f32 %v564, %v581
      %v586 = vmax.f32 %v583, 0.0
      %v587 = vmax.f32 %v584, 0.0
      %v588 = vmax.f32 %v585, 0.0
      %v589 = vld [vmem:[%s4] sm:$0xff]
      %v590 = vld [vmem:[%s4 + $0x8] sm:$0xff]
      %v592 = vsel %vm454, %v589, 0
      %v595 = vsel %vm454, %v590, 0
      %597 = vmatprep.subr.mxu0 0.0
      %598 = vmatpush1.msra.mxu0 %v586
      %599 = vmatprep.subr.mxu0 0.0
      %600 = vmatpush1.msra.mxu0 %v587
      %601 = vmatprep.subr.mxu0 0.0
      %602 = vmatpush1.msra.mxu0 0.0
      %603 = vmatprep.subr.mxu0 0.0
      %604 = vmatpush1.msra.mxu0 0.0
      %605 = vmatprep.subr.mxu0 0.0
      %606 = vmatpush1.msra.mxu0 0.0
      %607 = vmatprep.subr.mxu0 0.0
      %608 = vmatpush1.msra.mxu0 0.0
      %609 = vmatprep.subr.mxu0 0.0
      %610 = vmatpush1.msra.mxu0 0.0
      %611 = vmatprep.subr.mxu0 0.0
      %612 = vmatpush1.msra.mxu0 0.0
      %613 = vmatprep.subr.mxu0 0.0
      %614 = vmatpush1.msra.mxu0 0.0
      %615 = vmatprep.subr.mxu0 0.0
      %616 = vmatpush1.msra.mxu0 0.0
      %617 = vmatprep.subr.mxu0 0.0
      %618 = vmatpush1.msra.mxu0 0.0
      %619 = vmatprep.subr.mxu0 0.0
      %620 = vmatpush1.msra.mxu0 0.0
      %621 = vmatprep.subr.mxu0 0.0
      %622 = vmatpush1.msra.mxu0 0.0
      %623 = vmatprep.subr.mxu0 0.0
      %624 = vmatpush1.msra.mxu0 0.0
      %625 = vmatprep.subr.mxu0 0.0
      %626 = vmatpush1.msra.mxu0 0.0
      %627 = vmatprep.subr.mxu0 0.0
      %628 = vmatpush1.msra.mxu0 0.0
      %629 = vmatprep.subr.mxu0 0.0
      %630 = vmatpush1.msra.mxu0 0.0
      %631 = vmatprep.subr.mxu0 0.0
      %632 = vmatpush1.msra.mxu0 0.0
      %633 = vmatprep.subr.mxu0 0.0
      %634 = vmatpush1.msra.mxu0 0.0
      %635 = vmatprep.subr.mxu0 0.0
      %636 = vmatpush1.msra.mxu0 0.0
      %637 = vmatprep.subr.mxu0 0.0
      %638 = vmatpush1.msra.mxu0 0.0
      %639 = vmatprep.subr.mxu0 0.0
      %640 = vmatpush1.msra.mxu0 0.0
      %641 = vmatprep.subr.mxu0 0.0
      %642 = vmatpush1.msra.mxu0 0.0
      %643 = vmatprep.subr.mxu0 0.0
      %644 = vmatpush1.msra.mxu0 0.0
      %645 = vmatprep.subr.mxu0 0.0
      %646 = vmatpush1.msra.mxu0 0.0
      %647 = vmatprep.subr.mxu0 0.0
      %648 = vmatpush1.msra.mxu0 0.0
      %649 = vmatprep.subr.mxu0 0.0
      %650 = vmatpush1.msra.mxu0 0.0
      %651 = vmatprep.subr.mxu0 0.0
      %652 = vmatpush1.msra.mxu0 0.0
      %653 = vmatprep.subr.mxu0 0.0
      %654 = vmatpush1.msra.mxu0 0.0
      %655 = vmatprep.subr.mxu0 0.0
      %656 = vmatpush1.msra.mxu0 0.0
      %657 = vmatprep.subr.mxu0 0.0
      %658 = vmatpush1.msra.mxu0 0.0
      %659 = vmatprep.subr.mxu0 0.0
      %660 = vmatpush1.msra.mxu0 0.0
      %661 = vmatprep.mubr.f32.mxu0 0.0
      %662 = vmatmul.mubr.f32.gmra.mrb[0].mxu0 %v592
      %v663 = vpop.f32.mrb[0].mxu0
      %v664 = vadd.f32 0.0, %v663
      %v665 = vpop.f32.mrb[0].mxu0
      %666 = vmatprep.mubr.f32.mxu0 0.0
      %667 = vmatmul.mubr.f32.gmra.mrb[0].mxu0 %v595
      %v668 = vpop.f32.mrb[0].mxu0
      %v669 = vadd.f32 0.0, %v668
      %v670 = vpop.f32.mrb[0].mxu0
      %671 = vdwg.mxu0
      %v672 = vld [vmem:[%s5] sm:$0xff]
      %v673 = vld [vmem:[%s5 + $0x8] sm:$0xff]
      %675 = vset.pattern.permute.xlu0 0
      %676 = vperm.xlu0 %675, %v672
      %v677 = vpop.permute.xlu0 %676
      %680 = vset.pattern.permute.xlu0 0
      %681 = vperm.xlu0 %680, %v673
      %v682 = vpop.permute.xlu0 %681
      %v684 = vmul.f32 %v664, %v677
      %v685 = vmul.f32 %v669, %v682
      %v686 = vld [vmem:[%s6] sm:$0xff]
      %v687 = vld [vmem:[%s6 + $0x8] sm:$0xff]
      %689 = vset.pattern.permute.xlu0 0
      %690 = vperm.xlu0 %689, %v686
      %v691 = vpop.permute.xlu0 %690
      %694 = vset.pattern.permute.xlu0 0
      %695 = vperm.xlu0 %694, %v687
      %v696 = vpop.permute.xlu0 %695
      %v698 = vadd.f32 %v684, %v691
      %v699 = vadd.f32 %v685, %v696
      %v700 = vld [vmem:[#allocation4] sm:$0xff]
      %v701 = vld [vmem:[#allocation4 + $0x8] sm:$0xff]
      %v702 = vsel %vm427, %v698, -inf
      %703 = vmax.xlane.f32.xlu0 %v702
      %v704 = vpop.xlane.xlu0 %703
      %v705 = vsel %vm427, %v699, -inf
      %706 = vmax.xlane.f32.xlu0 %v705
      %v707 = vpop.xlane.xlu0 %706
      %v708 = vmax.f32 %v700, %v704
      %v709 = vmax.f32 %v701, %v707
      %710 = vst.msk [vmem:[#allocation4] sm:$0xff] %vm436, %v708
      %711 = vst.msk [vmem:[#allocation4 + $0x8] sm:$0xff] %vm436, %v709
      %v712 = vld [vmem:[%s7] sm:$0xff]
      %v713 = vld [vmem:[%s7 + $0x8] sm:$0xff]
      %vm714 = vcmask 31744
      %v716 = vsel %vm714, %v712, 0
      %v719 = vsel %vm714, %v713, 0
      %vm721 = vcmask 1043456
      %v723 = vsel %vm721, %v588, 0
      %725 = vmatprep.subr.mxu0 0.0
      %726 = vmatpush1.msra.mxu0 %v723
      %727 = vmatprep.subr.mxu0 0.0
      %728 = vmatpush1.msra.mxu0 0.0
      %729 = vmatprep.subr.mxu0 0.0
      %730 = vmatpush1.msra.mxu0 0.0
      %731 = vmatprep.subr.mxu0 0.0
      %732 = vmatpush1.msra.mxu0 0.0
      %733 = vmatprep.subr.mxu0 0.0
      %734 = vmatpush1.msra.mxu0 0.0
      %735 = vmatprep.subr.mxu0 0.0
      %736 = vmatpush1.msra.mxu0 0.0
      %737 = vmatprep.subr.mxu0 0.0
      %738 = vmatpush1.msra.mxu0 0.0
      %739 = vmatprep.subr.mxu0 0.0
      %740 = vmatpush1.msra.mxu0 0.0
      %741 = vmatprep.subr.mxu0 0.0
      %742 = vmatpush1.msra.mxu0 0.0
      %743 = vmatprep.subr.mxu0 0.0
      %744 = vmatpush1.msra.mxu0 0.0
      %745 = vmatprep.subr.mxu0 0.0
      %746 = vmatpush1.msra.mxu0 0.0
      %747 = vmatprep.subr.mxu0 0.0
      %748 = vmatpush1.msra.mxu0 0.0
      %749 = vmatprep.subr.mxu0 0.0
      %750 = vmatpush1.msra.mxu0 0.0
      %751 = vmatprep.subr.mxu0 0.0
      %752 = vmatpush1.msra.mxu0 0.0
      %753 = vmatprep.subr.mxu0 0.0
      %754 = vmatpush1.msra.mxu0 0.0
      %755 = vmatprep.subr.mxu0 0.0
      %756 = vmatpush1.msra.mxu0 0.0
      %757 = vmatprep.subr.mxu0 0.0
      %758 = vmatpush1.msra.mxu0 0.0
      %759 = vmatprep.subr.mxu0 0.0
      %760 = vmatpush1.msra.mxu0 0.0
      %761 = vmatprep.subr.mxu0 0.0
      %762 = vmatpush1.msra.mxu0 0.0
      %763 = vmatprep.subr.mxu0 0.0
      %764 = vmatpush1.msra.mxu0 0.0
      %765 = vmatprep.subr.mxu0 0.0
      %766 = vmatpush1.msra.mxu0 0.0
      %767 = vmatprep.subr.mxu0 0.0
      %768 = vmatpush1.msra.mxu0 0.0
      %769 = vmatprep.subr.mxu0 0.0
      %770 = vmatpush1.msra.mxu0 0.0
      %771 = vmatprep.subr.mxu0 0.0
      %772 = vmatpush1.msra.mxu0 0.0
      %773 = vmatprep.subr.mxu0 0.0
      %774 = vmatpush1.msra.mxu0 0.0
      %775 = vmatprep.subr.mxu0 0.0
      %776 = vmatpush1.msra.mxu0 0.0
      %777 = vmatprep.subr.mxu0 0.0
      %778 = vmatpush1.msra.mxu0 0.0
      %779 = vmatprep.subr.mxu0 0.0
      %780 = vmatpush1.msra.mxu0 0.0
      %781 = vmatprep.subr.mxu0 0.0
      %782 = vmatpush1.msra.mxu0 0.0
      %783 = vmatprep.subr.mxu0 0.0
      %784 = vmatpush1.msra.mxu0 0.0
      %785 = vmatprep.subr.mxu0 0.0
      %786 = vmatpush1.msra.mxu0 0.0
      %787 = vmatprep.subr.mxu0 0.0
      %788 = vmatpush1.msra.mxu0 0.0
      %789 = vmatprep.mubr.f32.mxu0 0.0
      %790 = vmatmul.mubr.f32.gmra.mrb[0].mxu0 %v716
      %v791 = vpop.f32.mrb[0].mxu0
      %v792 = vadd.f32 0.0, %v791
      %v793 = vpop.f32.mrb[0].mxu0
      %794 = vmatprep.mubr.f32.mxu0 0.0
      %795 = vmatmul.mubr.f32.gmra.mrb[0].mxu0 %v719
      %v796 = vpop.f32.mrb[0].mxu0
      %v797 = vadd.f32 0.0, %v796
      %v798 = vpop.f32.mrb[0].mxu0
      %799 = vdwg.mxu0
      %v800 = vld [vmem:[#allocation5] sm:$0xff]
      %v801 = vld [vmem:[#allocation5 + $0x8] sm:$0xff]
      %v802 = vsel %vm427, %v792, -inf
      %803 = vmax.xlane.f32.xlu0 %v802
      %v804 = vpop.xlane.xlu0 %803
      %v805 = vsel %vm427, %v797, -inf
      %806 = vmax.xlane.f32.xlu0 %v805
      %v807 = vpop.xlane.xlu0 %806
      %v808 = vmax.f32 %v800, %v804
      %v809 = vmax.f32 %v801, %v807
      %810 = vst.msk [vmem:[#allocation5] sm:$0xff] %vm436, %v808
      %811 = vst.msk [vmem:[#allocation5 + $0x8] sm:$0xff] %vm436, %v809
      // Predicated region
      $region69: #{tpu_custom_call.1} parent=63 // pred_check
        %p812 = pneg %p410
      $region70: #{tpu_custom_call.1} parent=63 // pred_check_branch
        %814 = sbr.rel (%p812) target = $region72
      $region71: #{tpu_custom_call.1} parent=63 // pred_region
        %v815 = vld [vmem:[#allocation3] sm:$0xff]
        %v816 = vld [vmem:[#allocation3 + $0x8] sm:$0xff]
        %v817 = vmul.f32 %v815, 0.015625
        %v818 = vmul.f32 %v816, 0.015625
        %v819 = vld [vmem:[#allocation5] sm:$0xff]
        %v820 = vld [vmem:[#allocation5 + $0x8] sm:$0xff]
        %v821 = vld [vmem:[%s8] sm:$0xff]
        %v822 = vld [vmem:[%s8 + $0x8] sm:$0xff]
        %v823 = vadd.f32 %v819, %v821
        %v824 = vadd.f32 %v820, %v822
        %v825 = vld [vmem:[#allocation2] sm:$0xff]
        %v826 = vld [vmem:[#allocation2 + $0x8] sm:$0xff]
        %v827 = vld [vmem:[#allocation4] sm:$0xff]
        %v828 = vld [vmem:[#allocation4 + $0x8] sm:$0xff]
        %831 = vrot.lane.b32.xlu0 %v817, 1
        %v832 = vpop.permute.xlu0 %831
        %833 = vrot.lane.b32.xlu0 %v818, 1
        %v834 = vpop.permute.xlu0 %833
        %839 = vrot.lane.b32.xlu0 %v827, 2
        %v840 = vpop.permute.xlu0 %839
        %841 = vrot.lane.b32.xlu0 %v828, 2
        %v842 = vpop.permute.xlu0 %841
        %847 = vrot.lane.b32.xlu0 %v823, 3
        %v848 = vpop.permute.xlu0 %847
        %849 = vrot.lane.b32.xlu0 %v824, 3
        %v850 = vpop.permute.xlu0 %849
        %v853 = vsel %vm436, %v825, %v832
        %v854 = vsel %vm436, %v826, %v834
        %vm855 = vcmask 15360
        %v856 = vsel %vm855, %v853, %v840
        %v857 = vsel %vm855, %v854, %v842
        %vm858 = vcmask 23552
        %v859 = vsel %vm858, %v856, %v848
        %v860 = vsel %vm858, %v857, %v850
        %v861 = vld [vmem:[%s9] sm:$0x3]
        %v863 = vsel %vm454, %v861, 0
        %865 = vmatprep.subr.mxu0 0.0
        %866 = vmatpush1.msra.mxu0 %v859
        %867 = vmatprep.subr.mxu0 0.0
        %868 = vmatpush1.msra.mxu0 %v860
        %869 = vmatprep.subr.mxu0 0.0
        %870 = vmatpush1.msra.mxu0 0.0
        %871 = vmatprep.subr.mxu0 0.0
        %872 = vmatpush1.msra.mxu0 0.0
        %873 = vmatprep.subr.mxu0 0.0
        %874 = vmatpush1.msra.mxu0 0.0
        %875 = vmatprep.subr.mxu0 0.0
        %876 = vmatpush1.msra.mxu0 0.0
        %877 = vmatprep.subr.mxu0 0.0
        %878 = vmatpush1.msra.mxu0 0.0
        %879 = vmatprep.subr.mxu0 0.0
        %880 = vmatpush1.msra.mxu0 0.0
        %881 = vmatprep.subr.mxu0 0.0
        %882 = vmatpush1.msra.mxu0 0.0
        %883 = vmatprep.subr.mxu0 0.0
        %884 = vmatpush1.msra.mxu0 0.0
        %885 = vmatprep.subr.mxu0 0.0
        %886 = vmatpush1.msra.mxu0 0.0
        %887 = vmatprep.subr.mxu0 0.0
        %888 = vmatpush1.msra.mxu0 0.0
        %889 = vmatprep.subr.mxu0 0.0
        %890 = vmatpush1.msra.mxu0 0.0
        %891 = vmatprep.subr.mxu0 0.0
        %892 = vmatpush1.msra.mxu0 0.0
        %893 = vmatprep.subr.mxu0 0.0
        %894 = vmatpush1.msra.mxu0 0.0
        %895 = vmatprep.subr.mxu0 0.0
        %896 = vmatpush1.msra.mxu0 0.0
        %897 = vmatprep.subr.mxu0 0.0
        %898 = vmatpush1.msra.mxu0 0.0
        %899 = vmatprep.subr.mxu0 0.0
        %900 = vmatpush1.msra.mxu0 0.0
        %901 = vmatprep.subr.mxu0 0.0
        %902 = vmatpush1.msra.mxu0 0.0
        %903 = vmatprep.subr.mxu0 0.0
        %904 = vmatpush1.msra.mxu0 0.0
        %905 = vmatprep.subr.mxu0 0.0
        %906 = vmatpush1.msra.mxu0 0.0
        %907 = vmatprep.subr.mxu0 0.0
        %908 = vmatpush1.msra.mxu0 0.0
        %909 = vmatprep.subr.mxu0 0.0
        %910 = vmatpush1.msra.mxu0 0.0
        %911 = vmatprep.subr.mxu0 0.0
        %912 = vmatpush1.msra.mxu0 0.0
        %913 = vmatprep.subr.mxu0 0.0
        %914 = vmatpush1.msra.mxu0 0.0
        %915 = vmatprep.subr.mxu0 0.0
        %916 = vmatpush1.msra.mxu0 0.0
        %917 = vmatprep.subr.mxu0 0.0
        %918 = vmatpush1.msra.mxu0 0.0
        %919 = vmatprep.subr.mxu0 0.0
        %920 = vmatpush1.msra.mxu0 0.0
        %921 = vmatprep.subr.mxu0 0.0
        %922 = vmatpush1.msra.mxu0 0.0
        %923 = vmatprep.subr.mxu0 0.0
        %924 = vmatpush1.msra.mxu0 0.0
        %925 = vmatprep.subr.mxu0 0.0
        %926 = vmatpush1.msra.mxu0 0.0
        %927 = vmatprep.subr.mxu0 0.0
        %928 = vmatpush1.msra.mxu0 0.0
        %929 = vmatprep.mubr.f32.mxu0 0.0
        %930 = vmatmul.mubr.f32.gmra.mrb[0].mxu0 %v863
        %v931 = vpop.f32.mrb[0].mxu0
        %v932 = vadd.f32 0.0, %v931
        %v933 = vpop.f32.mrb[0].mxu0
        %934 = vdwg.mxu0
        %v935 = vmax.f32 %v932, 0.0
        %v936 = vld [vmem:[%s10] sm:$0xff]
        %v937 = vld [vmem:[%s10 + $0x8] sm:$0xff]
        %v939 = vsel %vm855, %v936, 0
        %v942 = vsel %vm855, %v937, 0
        %vm944 = vcmask 1041408
        %v946 = vsel %vm944, %v935, 0
        %948 = vmatprep.subr.mxu0 0.0
        %949 = vmatpush1.msra.mxu0 %v946
        %950 = vmatprep.subr.mxu0 0.0
        %951 = vmatpush1.msra.mxu0 0.0
        %952 = vmatprep.subr.mxu0 0.0
        %953 = vmatpush1.msra.mxu0 0.0
        %954 = vmatprep.subr.mxu0 0.0
        %955 = vmatpush1.msra.mxu0 0.0
        %956 = vmatprep.subr.mxu0 0.0
        %957 = vmatpush1.msra.mxu0 0.0
        %958 = vmatprep.subr.mxu0 0.0
        %959 = vmatpush1.msra.mxu0 0.0
        %960 = vmatprep.subr.mxu0 0.0
        %961 = vmatpush1.msra.mxu0 0.0
        %962 = vmatprep.subr.mxu0 0.0
        %963 = vmatpush1.msra.mxu0 0.0
        %964 = vmatprep.subr.mxu0 0.0
        %965 = vmatpush1.msra.mxu0 0.0
        %966 = vmatprep.subr.mxu0 0.0
        %967 = vmatpush1.msra.mxu0 0.0
        %968 = vmatprep.subr.mxu0 0.0
        %969 = vmatpush1.msra.mxu0 0.0
        %970 = vmatprep.subr.mxu0 0.0
        %971 = vmatpush1.msra.mxu0 0.0
        %972 = vmatprep.subr.mxu0 0.0
        %973 = vmatpush1.msra.mxu0 0.0
        %974 = vmatprep.subr.mxu0 0.0
        %975 = vmatpush1.msra.mxu0 0.0
        %976 = vmatprep.subr.mxu0 0.0
        %977 = vmatpush1.msra.mxu0 0.0
        %978 = vmatprep.subr.mxu0 0.0
        %979 = vmatpush1.msra.mxu0 0.0
        %980 = vmatprep.subr.mxu0 0.0
        %981 = vmatpush1.msra.mxu0 0.0
        %982 = vmatprep.subr.mxu0 0.0
        %983 = vmatpush1.msra.mxu0 0.0
        %984 = vmatprep.subr.mxu0 0.0
        %985 = vmatpush1.msra.mxu0 0.0
        %986 = vmatprep.subr.mxu0 0.0
        %987 = vmatpush1.msra.mxu0 0.0
        %988 = vmatprep.subr.mxu0 0.0
        %989 = vmatpush1.msra.mxu0 0.0
        %990 = vmatprep.subr.mxu0 0.0
        %991 = vmatpush1.msra.mxu0 0.0
        %992 = vmatprep.subr.mxu0 0.0
        %993 = vmatpush1.msra.mxu0 0.0
        %994 = vmatprep.subr.mxu0 0.0
        %995 = vmatpush1.msra.mxu0 0.0
        %996 = vmatprep.subr.mxu0 0.0
        %997 = vmatpush1.msra.mxu0 0.0
        %998 = vmatprep.subr.mxu0 0.0
        %999 = vmatpush1.msra.mxu0 0.0
        %1000 = vmatprep.subr.mxu0 0.0
        %1001 = vmatpush1.msra.mxu0 0.0
        %1002 = vmatprep.subr.mxu0 0.0
        %1003 = vmatpush1.msra.mxu0 0.0
        %1004 = vmatprep.subr.mxu0 0.0
        %1005 = vmatpush1.msra.mxu0 0.0
        %1006 = vmatprep.subr.mxu0 0.0
        %1007 = vmatpush1.msra.mxu0 0.0
        %1008 = vmatprep.subr.mxu0 0.0
        %1009 = vmatpush1.msra.mxu0 0.0
        %1010 = vmatprep.subr.mxu0 0.0
        %1011 = vmatpush1.msra.mxu0 0.0
        %1012 = vmatprep.mubr.f32.mxu0 0.0
        %1013 = vmatmul.mubr.f32.gmra.mrb[0].mxu0 %v939
        %v1014 = vpop.f32.mrb[0].mxu0
        %v1015 = vadd.f32 0.0, %v1014
        %v1016 = vpop.f32.mrb[0].mxu0
        %1017 = vmatprep.mubr.f32.mxu0 0.0
        %1018 = vmatmul.mubr.f32.gmra.mrb[0].mxu0 %v942
        %v1019 = vpop.f32.mrb[0].mxu0
        %v1020 = vadd.f32 0.0, %v1019
        %v1021 = vpop.f32.mrb[0].mxu0
        %1022 = vdwg.mxu0
        %v1023 = vsel %vm714, %v1015, 0.0
        %1024 = vadd.xlane.f32.xlu0 %v1023
        %v1025 = vpop.xlane.xlu0 %1024
        %v1026 = vsel %vm714, %v1020, 0.0
        %1027 = vadd.xlane.f32.xlu0 %v1026
        %v1028 = vpop.xlane.xlu0 %1027
        %v1029 = vxor.u32 %v1025, 2147483648
        %v1030 = vxor.u32 %v1028, 2147483648
        %v1031 = vmul.f32 %v1029, 1.442695
        %v1032 = vpow.pop %v1031
        %v1033 = vmul.f32 %v1030, 1.442695
        %v1034 = vpow.pop %v1033
        %v1035 = vadd.f32 %v1032, 1.0
        %v1036 = vadd.f32 %v1034, 1.0
        %v1037 = vrcp.pop %v1035
        %v1038 = vmul.f32 1.0, %v1037
        %v1039 = vrcp.pop %v1036
        %v1040 = vmul.f32 1.0, %v1039
        %1041 = vst.msk [vmem:[%s409] sm:$0xff] %vm436, %v1038
        %1042 = vst.msk [vmem:[%s409 + $0x8] sm:$0xff] %vm436, %v1040
      $region72: #{tpu_custom_call.1} parent=63 // pred_fallthru
        _
      %p1043 = scmp.lt.s32.totalorder %s26, 1
      %s1044 = scalar_select %p1043, %s26, 1
      %s1045 = smul.addr %s1044, 2
      %s1046 = smul.addr %s1045, 8
      %s1047 = scalar_lea.vmem %s11, %s1046
      // Predicated region
      $region73: #{tpu_custom_call.1} parent=63 // pred_check
        %p1048 = pneg %p290
      $region74: #{tpu_custom_call.1} parent=63 // pred_check_branch
        %1050 = sbr.rel (%p1048) target = $region76
      $region75: #{tpu_custom_call.1} parent=63 // pred_region
        _
      $region76: #{tpu_custom_call.1} parent=63 // pred_fallthru
        _
    $region64: #{tpu_custom_call.1} parent=5 // pred_fallthru
      _
    %p1051 = scmp.le.s32.totalorder 2, %s17
    // Predicated region
    $region77: #{tpu_custom_call.1} parent=5 // pred_check
      %p1052 = pneg %p1051
    $region78: #{tpu_custom_call.1} parent=5 // pred_check_branch
      %1054 = sbr.rel (%p1052) target = $region80
    $region79: #{tpu_custom_call.1} parent=5 // pred_region
      %s1055 = ssub.s32 %s17, 2
      // Predicated region
      $region81: #{tpu_custom_call.1} parent=79 // pred_check
        %p1056 = pneg %p296
      $region82: #{tpu_custom_call.1} parent=79 // pred_check_branch
        %1058 = sbr.rel (%p1056) target = $region84
      $region83: #{tpu_custom_call.1} parent=79 // pred_region
        %p1059 = scmp.lt.s32.totalorder %s28, 1
        %s1060 = scalar_select %p1059, %s28, 1
        %s1061 = smul.addr %s1060, 2
        %s1062 = smul.addr %s1061, 8
        %s1063 = scalar_lea.vmem %s11, %s1062
      $region84: #{tpu_custom_call.1} parent=79 // pred_fallthru
        _
    $region80: #{tpu_custom_call.1} parent=5 // pred_fallthru
      _
  $region6: #{tpu_custom_call.1} parent=0 // loop_footer
    %s21 = sadd.s32 1, %s17
  $region7: #{tpu_custom_call.1} parent=0 // loop_footer_branch
    %16 = sbr.rel target = $region3
  $region8: #{tpu_custom_call.1} parent=0 // loop_exit
    _

</llo_original>
